<compile_context>
chip_gen: v5e
topology: v5e:2x2
jax: 0.10.0
libtpu: 0.0.40
codegen_flags: <defaults>
</compile_context>

<pallas_src>
import jax
import jax.numpy as jnp
import numpy as np
from jax.experimental import pallas as pl
from jax.experimental.pallas import tpu as pltpu


# ---------------------------------------------------------------------------
# Pallas kernel: Bt samples per grid step, one fused MXU contraction per step
# ---------------------------------------------------------------------------
def _csconv_kernel(theta_ref, aw_ref, bias_ref, patch_ref, o_ref):
    """Shapes seen per grid step (= Bt samples):
       theta_ref: (Bt, Pp, K)   f32   tap-broadcast softmax attention (columns)
       aw_ref:    (O, K*Pp)     f32   shared anchored weights, k-major flat
       bias_ref:  (Bt, O, 1)    f32   per-sample effective bias
       patch_ref: (Bt, Pp, HW)  bf16  lane-dense im2col slabs
       o_ref:     (Bt, O, HW)   f32   lane-dense output slabs
    """
    Bt, Pp, K = theta_ref.shape
    HW = patch_ref.shape[-1]

    # Shared weights: cast to bf16 ONCE per step (O*K*Pp elements, tiny).
    aw = aw_ref[...].astype(jnp.bfloat16)                     # (O, K*Pp)

    # Build the theta-scaled patch slab for all Bt samples of this step:
    #   sp[k*Pp + p, b*HW + h] = theta[b, k, c(p)] * patch[b, p, h]
    cols = []
    for b in range(Bt):                                       # static unroll
        patch = patch_ref[b].astype(jnp.float32)              # (Pp, HW)
        # k-major row order matches aw's (o, k*Pp + p) flattening; pieces are
        # Pp = multiple-of-8 rows -> sublane-aligned concatenation.
        sp_b = jnp.concatenate(
            [theta_ref[b, :, k:k + 1] * patch for k in range(K)], axis=0)
        cols.append(sp_b.astype(jnp.bfloat16))                # (K*Pp, HW)
    sp = jnp.concatenate(cols, axis=1)                        # (K*Pp, Bt*HW)

    # ONE MXU contraction per step, f32 accumulation.
    acc = jnp.dot(aw, sp, preferred_element_type=jnp.float32)  # (O, Bt*HW)

    # Per-sample bias add + lane-dense store (static 128-aligned lane slices).
    for b in range(Bt):
        o_ref[b] = (acc[:, b * HW:(b + 1) * HW]
                    + bias_ref[b]).astype(o_ref.dtype)


def cs_conv_pallas(theta_col, aw_flat, bias_eff, patch_all, *, num_steps):
    """theta_col: (B2, Pp, K) f32   aw_flat: (O, K*Pp) f32
       bias_eff:  (B2, O, 1)  f32   patch_all: (B2, Pp, HW) bf16
       returns    (B2, O, HW) f32"""
    B2, Pp, K = theta_col.shape
    O, KPp = aw_flat.shape
    HW = patch_all.shape[-1]
    assert B2 % num_steps == 0
    Bt = B2 // num_steps

    return pl.pallas_call(
        _csconv_kernel,
        out_shape=jax.ShapeDtypeStruct((B2, O, HW), jnp.float32),
        grid=(num_steps,),
        in_specs=[
            pl.BlockSpec((Bt, Pp, K), lambda s: (s, 0, 0)),    # theta (per step)
            pl.BlockSpec((O, KPp), lambda s: (0, 0)),          # weights (shared)
            pl.BlockSpec((Bt, O, 1), lambda s: (s, 0, 0)),     # bias (per step)
            pl.BlockSpec((Bt, Pp, HW), lambda s: (s, 0, 0)),   # im2col (per step)
        ],
        out_specs=pl.BlockSpec((Bt, O, HW), lambda s: (s, 0, 0)),
        compiler_params=pltpu.CompilerParams(
            dimension_semantics=("parallel",)),                # 2 TCs on v7x
    )(theta_col, aw_flat, bias_eff, patch_all)


# ---------------------------------------------------------------------------
# M_CFG attention head (plain JAX glue; tiny 1x1-conv MLPs on a 1x1 feature)
# ---------------------------------------------------------------------------
_BN_EPS = 1e-5


def _bn_eval(x, gamma, beta, rmean, rvar):
    return (x - rmean) / jnp.sqrt(rvar + _BN_EPS) * gamma + beta


def m_cfg_forward(s, params, T):
    """s: (B, 2C) global-average-pooled concat feature."""
    h1 = s @ params['fc1_1_w'].T
    h1 = _bn_eval(h1, *params['bn1_1'])
    h1 = jax.nn.relu(h1)
    z1 = h1 @ params['fc1_2_w'].T + params['fc1_2_b']
    z1 = _bn_eval(z1, *params['bn1_2'])

    h2 = s @ params['fc2_1_w'].T
    h2 = _bn_eval(h2, *params['bn2_1'])
    h2 = jax.nn.relu(h2)
    z2 = h2 @ params['fc2_2_w'].T + params['fc2_2_b']
    z2 = _bn_eval(z2, *params['bn2_2'])

    return (jax.nn.softmax(z1 / T, axis=1),
            jax.nn.softmax(z2 / T, axis=1))


# ---------------------------------------------------------------------------
# Full M_CSConv forward
# ---------------------------------------------------------------------------
def m_csconv_forward(center, boundary, params, *, K=3, T=34,
                     kernel_size=(3, 3), padding=1):
    B, C, H, W = center.shape
    KH, KW = kernel_size
    AW = params['anchored_w']                        # (K, O, C, KH, KW)
    Ab = params['anchored_b']                        # (K, O)
    O = AW.shape[1]
    HW = H * W
    n_tap = KH * KW
    P = n_tap * C
    Pp = -(-P // 8) * 8                              # pad rows to multiple of 8
    B2 = 2 * B

    # ---- M_CFG attention (glue) ----
    concat = jnp.concatenate([center, boundary], axis=1)          # (B, 2C, H, W)
    s = concat.mean(axis=(2, 3))                                  # (B, 2C)
    theta_c, theta_b = m_cfg_forward(s, params, T)                # each (B, K*C)

    # Stack center + boundary on the batch axis -> one merged kernel launch.
    x = jnp.concatenate([center, boundary], axis=0)               # (B2, C, H, W)
    theta3 = jnp.concatenate([theta_c.reshape(B, K, C),
                              theta_b.reshape(B, K, C)], axis=0)  # (B2, K, C)

    # Per-sample effective bias: mean_c(theta) @ Anchored_bia -> (B2, O, 1)
    bias_eff = (theta3.mean(axis=2) @ Ab)[:, :, None].astype(jnp.float32)

    # Tap-broadcast theta (p = tap*C + c), pad rows to Pp, lay out as columns
    # so the kernel can slice (Pp, 1) vectors without relayouts.
    theta_tap = jnp.tile(theta3, (1, 1, n_tap))                   # (B2, K, P)
    theta_tap = jnp.pad(theta_tap, ((0, 0), (0, 0), (0, Pp - P)))
    theta_col = jnp.transpose(theta_tap, (0, 2, 1)).astype(jnp.float32)  # (B2,Pp,K)

    # Shared anchored weights, flattened k-major with per-k padding to Pp:
    # aw_flat[o, k*Pp + tap*C + c] = AW[k, o, c, di, dj]; f32 (cast once in-kernel).
    aw_r = jnp.transpose(AW, (0, 1, 3, 4, 2)).reshape(K, O, P)    # (K, O, P)
    aw_r = jnp.pad(aw_r, ((0, 0), (0, 0), (0, Pp - P)))           # (K, O, Pp)
    aw_flat = jnp.transpose(aw_r, (1, 0, 2)).reshape(O, K * Pp).astype(jnp.float32)

    # im2col in the wrapper (layout plumbing): lane-dense (Pp, H*W) per sample.
    xp = jnp.pad(x, ((0, 0), (0, 0), (padding, padding), (padding, padding)))
    patches = [xp[:, :, di:di + H, dj:dj + W]
               for di in range(KH) for dj in range(KW)]           # 9 x (B2,C,H,W)
    patch_all = jnp.stack(patches, axis=1).reshape(B2, P, HW)
    patch_all = jnp.pad(patch_all, ((0, 0), (0, Pp - P), (0, 0)))
    patch_all = patch_all.astype(jnp.bfloat16)                    # (B2, Pp, HW)

    out = cs_conv_pallas(theta_col, aw_flat, bias_eff, patch_all,
                         num_steps=2)                             # (B2, O, HW)
    out = out.reshape(B2, O, H, W)                                # NCHW, no transpose
    return out[:B], out[B:]


# ---------------------------------------------------------------------------
# Pure-JAX f32 reference (mirrors the PyTorch forward) for a sanity check
# ---------------------------------------------------------------------------
def m_csconv_reference(center, boundary, params, *, K=3, T=34,
                       kernel_size=(3, 3), padding=1):
    B, C, H, W = center.shape
    KH, KW = kernel_size
    AW = params['anchored_w']
    Ab = params['anchored_b']

    concat = jnp.concatenate([center, boundary], axis=1)
    s = concat.mean(axis=(2, 3))
    theta_c, theta_b = m_cfg_forward(s, params, T)
    theta_c3 = theta_c.reshape(B, K, C)
    theta_b3 = theta_b.reshape(B, K, C)

    def conv(xin, th3):
        w = jnp.einsum('bkc,kocij->bocij', th3, AW)               # (B,O,C,KH,KW)
        xpad = jnp.pad(xin, ((0, 0), (0, 0),
                             (padding, padding), (padding, padding)))
        out = jnp.zeros((B, AW.shape[1], H, W), jnp.float32)
        for di in range(KH):
            for dj in range(KW):
                out = out + jnp.einsum('boc,bcyx->boyx',
                                       w[:, :, :, di, dj],
                                       xpad[:, :, di:di + H, dj:dj + W])
        bias = th3.mean(axis=2) @ Ab
        return out + bias[:, :, None, None]

    return conv(center, theta_c3), conv(boundary, theta_b3)


# ---------------------------------------------------------------------------
# Deterministic parameter initialization (mirrors the PyTorch __init__ shapes)
# ---------------------------------------------------------------------------
def init_params(key, in_planes, out_planes, K):
    C, O = in_planes, out_planes
    C2 = 2 * C                 # M_CFG in_planes
    hidden = C2                # since 2C != 3
    KC = int(K * C2 * 0.5)     # = K * C

    ks = jax.random.split(key, 8)

    def kaiming(k, shape, fan):
        return jax.random.normal(k, shape, jnp.float32) * jnp.sqrt(2.0 / fan)

    def bn_params(n):
        return (jnp.ones((n,), jnp.float32), jnp.zeros((n,), jnp.float32),
                jnp.zeros((n,), jnp.float32), jnp.ones((n,), jnp.float32))

    return {
        # M_CFG (1x1 convs stored as dense matrices)
        'fc1_1_w': kaiming(ks[0], (hidden, C2), C2),
        'bn1_1': bn_params(hidden),
        'fc1_2_w': kaiming(ks[1], (KC, hidden), hidden),
        'fc1_2_b': jnp.zeros((KC,), jnp.float32),
        'bn1_2': bn_params(KC),
        'fc2_1_w': kaiming(ks[2], (hidden, C2), C2),
        'bn2_1': bn_params(hidden),
        'fc2_2_w': kaiming(ks[3], (KC, hidden), hidden),
        'fc2_2_b': jnp.zeros((KC,), jnp.float32),
        'bn2_2': bn_params(KC),
        # M_CSConv anchored weights / bias (kaiming fan_out = O*KH*KW)
        'anchored_w': kaiming(ks[4], (K, O, C, 3, 3), O * 3 * 3),
        'anchored_b': jnp.zeros((K, O), jnp.float32),
    }


# ---------------------------------------------------------------------------
if __name__ == "__main__":
    B, C, O = 2, 4, 8
    H = W = 16
    K, T = 3, 34

    key = jax.random.PRNGKey(0)
    k_center, k_boundary, k_params = jax.random.split(key, 3)

    center = jax.random.normal(k_center, (B, C, H, W), jnp.float32)
    boundary = jax.random.normal(k_boundary, (B, C, H, W), jnp.float32)
    params = init_params(k_params, C, O, K)

    fwd = jax.jit(m_csconv_forward)
    out_c, out_b = jax.block_until_ready(fwd(center, boundary, params))

    assert out_c.shape == (B, O, H, W), out_c.shape
    assert out_b.shape == (B, O, H, W), out_b.shape
    assert bool(jnp.all(jnp.isfinite(out_c))) and bool(jnp.all(jnp.isfinite(out_b)))

    # Numerical check against a pure-JAX f32 reference (bf16 activations in the
    # kernel -> loose tolerance).
    ref_c, ref_b = m_csconv_reference(center, boundary, params)
    np.testing.assert_allclose(np.asarray(out_c), np.asarray(ref_c),
                               atol=1e-2, rtol=2e-2)
    np.testing.assert_allclose(np.asarray(out_b), np.asarray(ref_b),
                               atol=1e-2, rtol=2e-2)

    print("KERNEL_OK")
</pallas_src>

<mosaic_0001>
module attributes {stable_mosaic.version = 11 : i64} {
  func.func @_csconv_kernel(%arg0: i32, %arg1: memref<2x40x3xf32, #tpu.memory_space<vmem>>, %arg2: memref<8x120xf32, #tpu.memory_space<vmem>>, %arg3: memref<2x8x1xf32, #tpu.memory_space<vmem>>, %arg4: memref<2x40x256xbf16, #tpu.memory_space<vmem>>, %arg5: memref<2x8x256xf32, #tpu.memory_space<vmem>>) attributes {dimension_semantics = [#tpu.dimension_semantics<parallel>], iteration_bounds = array<i64: 2>, scalar_prefetch = 0 : i64, scratch_operands = 0 : i64, tpu.core_type = #tpu.core_type<tc>, window_params = [{transform_indices = @transform_0, window_bounds = array<i64: 2, 40, 3>}, {pipeline_mode = #tpu.pipeline_mode<synchronous>, transform_indices = @transform_1, window_bounds = array<i64: 8, 120>}, {transform_indices = @transform_2, window_bounds = array<i64: 2, 8, 1>}, {transform_indices = @transform_3, window_bounds = array<i64: 2, 40, 256>}, {transform_indices = @transform_4, window_bounds = array<i64: 2, 8, 256>}]} {
    %c0 = arith.constant 0 : index
    %c0_0 = arith.constant 0 : index
    %0 = vector.load %arg2[%c0, %c0_0] : memref<8x120xf32, #tpu.memory_space<vmem>>, vector<8x120xf32>
    %1 = arith.truncf %0 : vector<8x120xf32> to vector<8x120xbf16>
    %c0_1 = arith.constant 0 : index
    %c0_2 = arith.constant 0 : index
    %c0_3 = arith.constant 0 : index
    %2 = vector.load %arg4[%c0_1, %c0_2, %c0_3] : memref<2x40x256xbf16, #tpu.memory_space<vmem>>, vector<1x40x256xbf16>
    %3 = vector.shape_cast %2 : vector<1x40x256xbf16> to vector<40x256xbf16>
    %4 = arith.extf %3 : vector<40x256xbf16> to vector<40x256xf32>
    %c0_4 = arith.constant 0 : index
    %c0_5 = arith.constant 0 : index
    %c0_6 = arith.constant 0 : index
    %5 = vector.load %arg1[%c0_4, %c0_5, %c0_6] : memref<2x40x3xf32, #tpu.memory_space<vmem>>, vector<1x40x1xf32>
    %6 = vector.shape_cast %5 : vector<1x40x1xf32> to vector<40x1xf32>
    %7 = vector.broadcast %6 : vector<40x1xf32> to vector<40x256xf32>
    %8 = arith.mulf %7, %4 : vector<40x256xf32>
    %c0_7 = arith.constant 0 : index
    %c0_8 = arith.constant 0 : index
    %c1 = arith.constant 1 : index
    %9 = vector.load %arg1[%c0_7, %c0_8, %c1] : memref<2x40x3xf32, #tpu.memory_space<vmem>>, vector<1x40x1xf32>
    %10 = vector.shape_cast %9 : vector<1x40x1xf32> to vector<40x1xf32>
    %11 = vector.broadcast %10 : vector<40x1xf32> to vector<40x256xf32>
    %12 = arith.mulf %11, %4 : vector<40x256xf32>
    %c0_9 = arith.constant 0 : index
    %c0_10 = arith.constant 0 : index
    %c2 = arith.constant 2 : index
    %13 = vector.load %arg1[%c0_9, %c0_10, %c2] : memref<2x40x3xf32, #tpu.memory_space<vmem>>, vector<1x40x1xf32>
    %14 = vector.shape_cast %13 : vector<1x40x1xf32> to vector<40x1xf32>
    %15 = vector.broadcast %14 : vector<40x1xf32> to vector<40x256xf32>
    %16 = arith.mulf %15, %4 : vector<40x256xf32>
    %17 = tpu.concatenate %8, %12, %16 in 0 : vector<40x256xf32>, vector<40x256xf32>, vector<40x256xf32> -> vector<120x256xf32>
    %18 = arith.truncf %17 : vector<120x256xf32> to vector<120x256xbf16>
    %c1_11 = arith.constant 1 : index
    %c0_12 = arith.constant 0 : index
    %c0_13 = arith.constant 0 : index
    %19 = vector.load %arg4[%c1_11, %c0_12, %c0_13] : memref<2x40x256xbf16, #tpu.memory_space<vmem>>, vector<1x40x256xbf16>
    %20 = vector.shape_cast %19 : vector<1x40x256xbf16> to vector<40x256xbf16>
    %21 = arith.extf %20 : vector<40x256xbf16> to vector<40x256xf32>
    %c1_14 = arith.constant 1 : index
    %c0_15 = arith.constant 0 : index
    %c0_16 = arith.constant 0 : index
    %22 = vector.load %arg1[%c1_14, %c0_15, %c0_16] : memref<2x40x3xf32, #tpu.memory_space<vmem>>, vector<1x40x1xf32>
    %23 = vector.shape_cast %22 : vector<1x40x1xf32> to vector<40x1xf32>
    %24 = vector.broadcast %23 : vector<40x1xf32> to vector<40x256xf32>
    %25 = arith.mulf %24, %21 : vector<40x256xf32>
    %c1_17 = arith.constant 1 : index
    %c0_18 = arith.constant 0 : index
    %c1_19 = arith.constant 1 : index
    %26 = vector.load %arg1[%c1_17, %c0_18, %c1_19] : memref<2x40x3xf32, #tpu.memory_space<vmem>>, vector<1x40x1xf32>
    %27 = vector.shape_cast %26 : vector<1x40x1xf32> to vector<40x1xf32>
    %28 = vector.broadcast %27 : vector<40x1xf32> to vector<40x256xf32>
    %29 = arith.mulf %28, %21 : vector<40x256xf32>
    %c1_20 = arith.constant 1 : index
    %c0_21 = arith.constant 0 : index
    %c2_22 = arith.constant 2 : index
    %30 = vector.load %arg1[%c1_20, %c0_21, %c2_22] : memref<2x40x3xf32, #tpu.memory_space<vmem>>, vector<1x40x1xf32>
    %31 = vector.shape_cast %30 : vector<1x40x1xf32> to vector<40x1xf32>
    %32 = vector.broadcast %31 : vector<40x1xf32> to vector<40x256xf32>
    %33 = arith.mulf %32, %21 : vector<40x256xf32>
    %34 = tpu.concatenate %25, %29, %33 in 0 : vector<40x256xf32>, vector<40x256xf32>, vector<40x256xf32> -> vector<120x256xf32>
    %35 = arith.truncf %34 : vector<120x256xf32> to vector<120x256xbf16>
    %36 = tpu.concatenate %18, %35 in 1 : vector<120x256xbf16>, vector<120x256xbf16> -> vector<120x512xbf16>
    %cst = arith.constant dense<0.000000e+00> : vector<8x512xf32>
    %37 = tpu.matmul %1, %36, %cst {dimension_numbers = #tpu.dot_dimension_numbers<[1], [0], [0], [1], [0, 0, 1, 1], [], []>} : vector<8x120xbf16>, vector<120x512xbf16>, vector<8x512xf32> -> vector<8x512xf32>
    %38 = vector.extract_strided_slice %37 {offsets = [0, 0], sizes = [8, 256], strides = [1, 1]} : vector<8x512xf32> to vector<8x256xf32>
    %c0_23 = arith.constant 0 : index
    %c0_24 = arith.constant 0 : index
    %c0_25 = arith.constant 0 : index
    %39 = vector.load %arg3[%c0_23, %c0_24, %c0_25] : memref<2x8x1xf32, #tpu.memory_space<vmem>>, vector<1x8x1xf32>
    %40 = vector.shape_cast %39 : vector<1x8x1xf32> to vector<8x1xf32>
    %41 = vector.broadcast %40 : vector<8x1xf32> to vector<8x256xf32>
    %42 = arith.addf %38, %41 : vector<8x256xf32>
    %c0_26 = arith.constant 0 : index
    %c0_27 = arith.constant 0 : index
    %c0_28 = arith.constant 0 : index
    %43 = vector.load %arg5[%c0_26, %c0_27, %c0_28] : memref<2x8x256xf32, #tpu.memory_space<vmem>>, vector<1x8x256xf32>
    %44 = vector.shape_cast %43 : vector<1x8x256xf32> to vector<8x256xf32>
    %45 = vector.shape_cast %42 : vector<8x256xf32> to vector<1x8x256xf32>
    tpu.vector_store %arg5[%c0_26, %c0_27, %c0_28], %45 {strides = array<i32>} : memref<2x8x256xf32, #tpu.memory_space<vmem>>, vector<1x8x256xf32>,
    %46 = vector.extract_strided_slice %37 {offsets = [0, 256], sizes = [8, 256], strides = [1, 1]} : vector<8x512xf32> to vector<8x256xf32>
    %c1_29 = arith.constant 1 : index
    %c0_30 = arith.constant 0 : index
    %c0_31 = arith.constant 0 : index
    %47 = vector.load %arg3[%c1_29, %c0_30, %c0_31] : memref<2x8x1xf32, #tpu.memory_space<vmem>>, vector<1x8x1xf32>
    %48 = vector.shape_cast %47 : vector<1x8x1xf32> to vector<8x1xf32>
    %49 = vector.broadcast %48 : vector<8x1xf32> to vector<8x256xf32>
    %50 = arith.addf %46, %49 : vector<8x256xf32>
    %c1_32 = arith.constant 1 : index
    %c0_33 = arith.constant 0 : index
    %c0_34 = arith.constant 0 : index
    %51 = vector.load %arg5[%c1_32, %c0_33, %c0_34] : memref<2x8x256xf32, #tpu.memory_space<vmem>>, vector<1x8x256xf32>
    %52 = vector.shape_cast %51 : vector<1x8x256xf32> to vector<8x256xf32>
    %53 = vector.shape_cast %50 : vector<8x256xf32> to vector<1x8x256xf32>
    tpu.vector_store %arg5[%c1_32, %c0_33, %c0_34], %53 {strides = array<i32>} : memref<2x8x256xf32, #tpu.memory_space<vmem>>, vector<1x8x256xf32>,
    return
  }
  func.func @transform_0(%arg0: i32) -> (i32, i32, i32) {
    %c0_i32 = arith.constant 0 : i32
    %c0_i32_0 = arith.constant 0 : i32
    %c0_i32_1 = arith.constant 0 : i32
    return %arg0, %c0_i32, %c0_i32_0 : i32, i32, i32
  }
  func.func @transform_1(%arg0: i32) -> (i32, i32) {
    %c0_i32 = arith.constant 0 : i32
    %c0_i32_0 = arith.constant 0 : i32
    %c0_i32_1 = arith.constant 0 : i32
    return %c0_i32, %c0_i32_0 : i32, i32
  }
  func.func @transform_2(%arg0: i32) -> (i32, i32, i32) {
    %c0_i32 = arith.constant 0 : i32
    %c0_i32_0 = arith.constant 0 : i32
    %c0_i32_1 = arith.constant 0 : i32
    return %arg0, %c0_i32, %c0_i32_0 : i32, i32, i32
  }
  func.func @transform_3(%arg0: i32) -> (i32, i32, i32) {
    %c0_i32 = arith.constant 0 : i32
    %c0_i32_0 = arith.constant 0 : i32
    %c0_i32_1 = arith.constant 0 : i32
    return %arg0, %c0_i32, %c0_i32_0 : i32, i32, i32
  }
  func.func @transform_4(%arg0: i32) -> (i32, i32, i32) {
    %c0_i32 = arith.constant 0 : i32
    %c0_i32_0 = arith.constant 0 : i32
    %c0_i32_1 = arith.constant 0 : i32
    return %arg0, %c0_i32, %c0_i32_0 : i32, i32, i32
  }
}

</mosaic_0001>

<llo_original>
// kernel: tile.9
$region0: #{tile.9}
  %s0 = inlined_call_operand.vmem [shape: f32[4,3,9,4], index: 0, kind: input, shape index: {}]
  %s1 = inlined_call_operand.vmem [shape: f32[4,3,36], index: 1, kind: output, shape index: {}]
  $region1: #{tile.9} parent=0
    #allocation0 [shape = 'u8[12288]{0}', space=vmem, size = 0x3000, scoped, tag = 'scoped mem for output reshape']
    %s2 = smov 3
    %v3 = vld [vmem:[%s0] ss:$16 sm:%s2]
    %s4 = smov 12
    %v5 = vld [vmem:[%s0] ss:$16 sm:%s4]
    %vm6 = vcmask 1043458
    %v7 = vsel %vm6, %v5, %v3
    %s8 = smov 48
    %v9 = vld [vmem:[%s0] ss:$16 sm:%s8]
    %vm10 = vcmask 1045508
    %v11 = vsel %vm10, %v9, %v7
    %s12 = smov 192
    %v13 = vld [vmem:[%s0] ss:$16 sm:%s12]
    %vm14 = vcmask 1047558
    %v15 = vsel %vm14, %v13, %v11
    %vm16 = vcmask 31744
    %17 = vst.msk [vmem:[#allocation0] sm:$0xf] %vm16, %v15
    %s18 = scalar_lea.vmem [#allocation0], 4
    %19 = vst.msk [vmem:[%s18] sm:$0xf0] %vm16, %v15
    %s20 = scalar_lea.vmem %s0, 128
    %s21 = smov 3
    %v22 = vld [vmem:[%s20] ss:$16 sm:%s21]
    %s23 = scalar_lea.vmem %s0, 128
    %s24 = smov 12
    %v25 = vld [vmem:[%s23] ss:$16 sm:%s24]
    %vm26 = vcmask 1043458
    %v27 = vsel %vm26, %v25, %v22
    %vm28 = vcmask 31744
    %s29 = scalar_lea.vmem [#allocation0], 16
    %30 = vst.msk [vmem:[%s29] sm:$0xf] %vm28, %v27
    %s31 = scalar_lea.vmem %s0, 8
    %s32 = smov 3
    %v33 = vld [vmem:[%s31] ss:$16 sm:%s32]
    %s34 = scalar_lea.vmem %s0, 8
    %s35 = smov 12
    %v36 = vld [vmem:[%s34] ss:$16 sm:%s35]
    %vm37 = vcmask 1043458
    %v38 = vsel %vm37, %v36, %v33
    %s39 = scalar_lea.vmem %s0, 8
    %s40 = smov 48
    %v41 = vld [vmem:[%s39] ss:$16 sm:%s40]
    %vm42 = vcmask 1045508
    %v43 = vsel %vm42, %v41, %v38
    %s44 = scalar_lea.vmem %s0, 8
    %s45 = smov 192
    %v46 = vld [vmem:[%s44] ss:$16 sm:%s45]
    %vm47 = vcmask 1047558
    %v48 = vsel %vm47, %v46, %v43
    %49 = vrot.lane.b32.xlu0 %v48, 32
    %v50 = vpop.permute.xlu0 %49
    %vm51 = vcmask 294144
    %52 = vst.msk [vmem:[#allocation0] sm:$0xf] %vm51, %v50
    %s53 = scalar_lea.vmem [#allocation0], 4
    %54 = vst.msk [vmem:[%s53] sm:$0xf0] %vm51, %v50
    %s55 = scalar_lea.vmem %s0, 136
    %s56 = smov 3
    %v57 = vld [vmem:[%s55] ss:$16 sm:%s56]
    %s58 = scalar_lea.vmem %s0, 136
    %s59 = smov 12
    %v60 = vld [vmem:[%s58] ss:$16 sm:%s59]
    %vm61 = vcmask 1043458
    %v62 = vsel %vm61, %v60, %v57
    %63 = vrot.lane.b32.xlu0 %v62, 32
    %v64 = vpop.permute.xlu0 %63
    %vm65 = vcmask 294144
    %s66 = scalar_lea.vmem [#allocation0], 16
    %67 = vst.msk [vmem:[%s66] sm:$0xf] %vm65, %v64
    %s68 = scalar_lea.vmem %s0, 7
    %s69 = smov 3
    %v70 = vld [vmem:[%s68] ss:$16 sm:%s69]
    %s71 = scalar_lea.vmem %s0, 7
    %s72 = smov 12
    %v73 = vld [vmem:[%s71] ss:$16 sm:%s72]
    %vm74 = vcmask 1043458
    %v75 = vsel %vm74, %v73, %v70
    %s76 = scalar_lea.vmem %s0, 7
    %s77 = smov 48
    %v78 = vld [vmem:[%s76] ss:$16 sm:%s77]
    %vm79 = vcmask 1045508
    %v80 = vsel %vm79, %v78, %v75
    %s81 = scalar_lea.vmem %s0, 7
    %s82 = smov 192
    %v83 = vld [vmem:[%s81] ss:$16 sm:%s82]
    %vm84 = vcmask 1047558
    %v85 = vsel %vm84, %v83, %v80
    %86 = vrot.lane.b32.xlu0 %v85, 28
    %v87 = vpop.permute.xlu0 %86
    %vm88 = vcmask 261344
    %89 = vst.msk [vmem:[#allocation0] sm:$0xf] %vm88, %v87
    %s90 = scalar_lea.vmem [#allocation0], 4
    %91 = vst.msk [vmem:[%s90] sm:$0xf0] %vm88, %v87
    %s92 = scalar_lea.vmem %s0, 135
    %s93 = smov 3
    %v94 = vld [vmem:[%s92] ss:$16 sm:%s93]
    %s95 = scalar_lea.vmem %s0, 135
    %s96 = smov 12
    %v97 = vld [vmem:[%s95] ss:$16 sm:%s96]
    %vm98 = vcmask 1043458
    %v99 = vsel %vm98, %v97, %v94
    %100 = vrot.lane.b32.xlu0 %v99, 28
    %v101 = vpop.permute.xlu0 %100
    %vm102 = vcmask 261344
    %s103 = scalar_lea.vmem [#allocation0], 16
    %104 = vst.msk [vmem:[%s103] sm:$0xf] %vm102, %v101
    %s105 = scalar_lea.vmem %s0, 6
    %s106 = smov 3
    %v107 = vld [vmem:[%s105] ss:$16 sm:%s106]
    %s108 = scalar_lea.vmem %s0, 6
    %s109 = smov 12
    %v110 = vld [vmem:[%s108] ss:$16 sm:%s109]
    %vm111 = vcmask 1043458
    %v112 = vsel %vm111, %v110, %v107
    %s113 = scalar_lea.vmem %s0, 6
    %s114 = smov 48
    %v115 = vld [vmem:[%s113] ss:$16 sm:%s114]
    %vm116 = vcmask 1045508
    %v117 = vsel %vm116, %v115, %v112
    %s118 = scalar_lea.vmem %s0, 6
    %s119 = smov 192
    %v120 = vld [vmem:[%s118] ss:$16 sm:%s119]
    %vm121 = vcmask 1047558
    %v122 = vsel %vm121, %v120, %v117
    %123 = vrot.lane.b32.xlu0 %v122, 24
    %v124 = vpop.permute.xlu0 %123
    %vm125 = vcmask 228544
    %126 = vst.msk [vmem:[#allocation0] sm:$0xf] %vm125, %v124
    %s127 = scalar_lea.vmem [#allocation0], 4
    %128 = vst.msk [vmem:[%s127] sm:$0xf0] %vm125, %v124
    %s129 = scalar_lea.vmem %s0, 134
    %s130 = smov 3
    %v131 = vld [vmem:[%s129] ss:$16 sm:%s130]
    %s132 = scalar_lea.vmem %s0, 134
    %s133 = smov 12
    %v134 = vld [vmem:[%s132] ss:$16 sm:%s133]
    %vm135 = vcmask 1043458
    %v136 = vsel %vm135, %v134, %v131
    %137 = vrot.lane.b32.xlu0 %v136, 24
    %v138 = vpop.permute.xlu0 %137
    %vm139 = vcmask 228544
    %s140 = scalar_lea.vmem [#allocation0], 16
    %141 = vst.msk [vmem:[%s140] sm:$0xf] %vm139, %v138
    %s142 = scalar_lea.vmem %s0, 5
    %s143 = smov 3
    %v144 = vld [vmem:[%s142] ss:$16 sm:%s143]
    %s145 = scalar_lea.vmem %s0, 5
    %s146 = smov 12
    %v147 = vld [vmem:[%s145] ss:$16 sm:%s146]
    %vm148 = vcmask 1043458
    %v149 = vsel %vm148, %v147, %v144
    %s150 = scalar_lea.vmem %s0, 5
    %s151 = smov 48
    %v152 = vld [vmem:[%s150] ss:$16 sm:%s151]
    %vm153 = vcmask 1045508
    %v154 = vsel %vm153, %v152, %v149
    %s155 = scalar_lea.vmem %s0, 5
    %s156 = smov 192
    %v157 = vld [vmem:[%s155] ss:$16 sm:%s156]
    %vm158 = vcmask 1047558
    %v159 = vsel %vm158, %v157, %v154
    %160 = vrot.lane.b32.xlu0 %v159, 20
    %v161 = vpop.permute.xlu0 %160
    %vm162 = vcmask 195744
    %163 = vst.msk [vmem:[#allocation0] sm:$0xf] %vm162, %v161
    %s164 = scalar_lea.vmem [#allocation0], 4
    %165 = vst.msk [vmem:[%s164] sm:$0xf0] %vm162, %v161
    %s166 = scalar_lea.vmem %s0, 133
    %s167 = smov 3
    %v168 = vld [vmem:[%s166] ss:$16 sm:%s167]
    %s169 = scalar_lea.vmem %s0, 133
    %s170 = smov 12
    %v171 = vld [vmem:[%s169] ss:$16 sm:%s170]
    %vm172 = vcmask 1043458
    %v173 = vsel %vm172, %v171, %v168
    %174 = vrot.lane.b32.xlu0 %v173, 20
    %v175 = vpop.permute.xlu0 %174
    %vm176 = vcmask 195744
    %s177 = scalar_lea.vmem [#allocation0], 16
    %178 = vst.msk [vmem:[%s177] sm:$0xf] %vm176, %v175
    %s179 = scalar_lea.vmem %s0, 4
    %s180 = smov 3
    %v181 = vld [vmem:[%s179] ss:$16 sm:%s180]
    %s182 = scalar_lea.vmem %s0, 4
    %s183 = smov 12
    %v184 = vld [vmem:[%s182] ss:$16 sm:%s183]
    %vm185 = vcmask 1043458
    %v186 = vsel %vm185, %v184, %v181
    %s187 = scalar_lea.vmem %s0, 4
    %s188 = smov 48
    %v189 = vld [vmem:[%s187] ss:$16 sm:%s188]
    %vm190 = vcmask 1045508
    %v191 = vsel %vm190, %v189, %v186
    %s192 = scalar_lea.vmem %s0, 4
    %s193 = smov 192
    %v194 = vld [vmem:[%s192] ss:$16 sm:%s193]
    %vm195 = vcmask 1047558
    %v196 = vsel %vm195, %v194, %v191
    %197 = vrot.lane.b32.xlu0 %v196, 16
    %v198 = vpop.permute.xlu0 %197
    %vm199 = vcmask 162944
    %200 = vst.msk [vmem:[#allocation0] sm:$0xf] %vm199, %v198
    %s201 = scalar_lea.vmem [#allocation0], 4
    %202 = vst.msk [vmem:[%s201] sm:$0xf0] %vm199, %v198
    %s203 = scalar_lea.vmem %s0, 132
    %s204 = smov 3
    %v205 = vld [vmem:[%s203] ss:$16 sm:%s204]
    %s206 = scalar_lea.vmem %s0, 132
    %s207 = smov 12
    %v208 = vld [vmem:[%s206] ss:$16 sm:%s207]
    %vm209 = vcmask 1043458
    %v210 = vsel %vm209, %v208, %v205
    %211 = vrot.lane.b32.xlu0 %v210, 16
    %v212 = vpop.permute.xlu0 %211
    %vm213 = vcmask 162944
    %s214 = scalar_lea.vmem [#allocation0], 16
    %215 = vst.msk [vmem:[%s214] sm:$0xf] %vm213, %v212
    %s216 = scalar_lea.vmem %s0, 3
    %s217 = smov 3
    %v218 = vld [vmem:[%s216] ss:$16 sm:%s217]
    %s219 = scalar_lea.vmem %s0, 3
    %s220 = smov 12
    %v221 = vld [vmem:[%s219] ss:$16 sm:%s220]
    %vm222 = vcmask 1043458
    %v223 = vsel %vm222, %v221, %v218
    %s224 = scalar_lea.vmem %s0, 3
    %s225 = smov 48
    %v226 = vld [vmem:[%s224] ss:$16 sm:%s225]
    %vm227 = vcmask 1045508
    %v228 = vsel %vm227, %v226, %v223
    %s229 = scalar_lea.vmem %s0, 3
    %s230 = smov 192
    %v231 = vld [vmem:[%s229] ss:$16 sm:%s230]
    %vm232 = vcmask 1047558
    %v233 = vsel %vm232, %v231, %v228
    %234 = vrot.lane.b32.xlu0 %v233, 12
    %v235 = vpop.permute.xlu0 %234
    %vm236 = vcmask 130144
    %237 = vst.msk [vmem:[#allocation0] sm:$0xf] %vm236, %v235
    %s238 = scalar_lea.vmem [#allocation0], 4
    %239 = vst.msk [vmem:[%s238] sm:$0xf0] %vm236, %v235
    %s240 = scalar_lea.vmem %s0, 131
    %s241 = smov 3
    %v242 = vld [vmem:[%s240] ss:$16 sm:%s241]
    %s243 = scalar_lea.vmem %s0, 131
    %s244 = smov 12
    %v245 = vld [vmem:[%s243] ss:$16 sm:%s244]
    %vm246 = vcmask 1043458
    %v247 = vsel %vm246, %v245, %v242
    %248 = vrot.lane.b32.xlu0 %v247, 12
    %v249 = vpop.permute.xlu0 %248
    %vm250 = vcmask 130144
    %s251 = scalar_lea.vmem [#allocation0], 16
    %252 = vst.msk [vmem:[%s251] sm:$0xf] %vm250, %v249
    %s253 = scalar_lea.vmem %s0, 2
    %s254 = smov 3
    %v255 = vld [vmem:[%s253] ss:$16 sm:%s254]
    %s256 = scalar_lea.vmem %s0, 2
    %s257 = smov 12
    %v258 = vld [vmem:[%s256] ss:$16 sm:%s257]
    %vm259 = vcmask 1043458
    %v260 = vsel %vm259, %v258, %v255
    %s261 = scalar_lea.vmem %s0, 2
    %s262 = smov 48
    %v263 = vld [vmem:[%s261] ss:$16 sm:%s262]
    %vm264 = vcmask 1045508
    %v265 = vsel %vm264, %v263, %v260
    %s266 = scalar_lea.vmem %s0, 2
    %s267 = smov 192
    %v268 = vld [vmem:[%s266] ss:$16 sm:%s267]
    %vm269 = vcmask 1047558
    %v270 = vsel %vm269, %v268, %v265
    %271 = vrot.lane.b32.xlu0 %v270, 8
    %v272 = vpop.permute.xlu0 %271
    %vm273 = vcmask 97344
    %274 = vst.msk [vmem:[#allocation0] sm:$0xf] %vm273, %v272
    %s275 = scalar_lea.vmem [#allocation0], 4
    %276 = vst.msk [vmem:[%s275] sm:$0xf0] %vm273, %v272
    %s277 = scalar_lea.vmem %s0, 130
    %s278 = smov 3
    %v279 = vld [vmem:[%s277] ss:$16 sm:%s278]
    %s280 = scalar_lea.vmem %s0, 130
    %s281 = smov 12
    %v282 = vld [vmem:[%s280] ss:$16 sm:%s281]
    %vm283 = vcmask 1043458
    %v284 = vsel %vm283, %v282, %v279
    %285 = vrot.lane.b32.xlu0 %v284, 8
    %v286 = vpop.permute.xlu0 %285
    %vm287 = vcmask 97344
    %s288 = scalar_lea.vmem [#allocation0], 16
    %289 = vst.msk [vmem:[%s288] sm:$0xf] %vm287, %v286
    %s290 = scalar_lea.vmem %s0, 1
    %s291 = smov 3
    %v292 = vld [vmem:[%s290] ss:$16 sm:%s291]
    %s293 = scalar_lea.vmem %s0, 1
    %s294 = smov 12
    %v295 = vld [vmem:[%s293] ss:$16 sm:%s294]
    %vm296 = vcmask 1043458
    %v297 = vsel %vm296, %v295, %v292
    %s298 = scalar_lea.vmem %s0, 1
    %s299 = smov 48
    %v300 = vld [vmem:[%s298] ss:$16 sm:%s299]
    %vm301 = vcmask 1045508
    %v302 = vsel %vm301, %v300, %v297
    %s303 = scalar_lea.vmem %s0, 1
    %s304 = smov 192
    %v305 = vld [vmem:[%s303] ss:$16 sm:%s304]
    %vm306 = vcmask 1047558
    %v307 = vsel %vm306, %v305, %v302
    %308 = vrot.lane.b32.xlu0 %v307, 4
    %v309 = vpop.permute.xlu0 %308
    %vm310 = vcmask 64544
    %311 = vst.msk [vmem:[#allocation0] sm:$0xf] %vm310, %v309
    %s312 = scalar_lea.vmem [#allocation0], 4
    %313 = vst.msk [vmem:[%s312] sm:$0xf0] %vm310, %v309
    %s314 = scalar_lea.vmem %s0, 129
    %s315 = smov 3
    %v316 = vld [vmem:[%s314] ss:$16 sm:%s315]
    %s317 = scalar_lea.vmem %s0, 129
    %s318 = smov 12
    %v319 = vld [vmem:[%s317] ss:$16 sm:%s318]
    %vm320 = vcmask 1043458
    %v321 = vsel %vm320, %v319, %v316
    %322 = vrot.lane.b32.xlu0 %v321, 4
    %v323 = vpop.permute.xlu0 %322
    %vm324 = vcmask 64544
    %s325 = scalar_lea.vmem [#allocation0], 16
    %326 = vst.msk [vmem:[%s325] sm:$0xf] %vm324, %v323
    %s328 = ssub.s32 16, 1
    %v329 = vld [vmem:[#allocation0] sm:%s328]
    %s331 = ssub.s32 16, 1
    %332 = vst [vmem:[%s1] sm:%s331] %v329
    %s333 = scalar_lea.vmem [#allocation0], 8
    %v334 = vld [vmem:[%s333] sm:%s328]
    %s336 = ssub.s32 16, 1
    %s337 = scalar_lea.vmem %s1, 4
    %338 = vst [vmem:[%s337] sm:%s336] %v334
    %s339 = scalar_lea.vmem [#allocation0], 16
    %v340 = vld [vmem:[%s339] sm:%s328]
    %s342 = ssub.s32 16, 1
    %s343 = scalar_lea.vmem %s1, 8
    %344 = vst [vmem:[%s343] sm:%s342] %v340

// kernel: m_csconv_forward.1
$region0: #{m_csconv_forward.1}
  #allocation0 [shape = 'u32[]', space=smem, size = 0x4, offset = 0x4, fixed_abs, tag = 'smem constant byte address 0x4 - core index']
  #allocation1 [shape = 'u32[72,128]{1,0:T(1,128)}', space=vmem, size = 0x9000, scoped, tag = 'internal scratch']
  %s0 = inlined_call_operand.vmem [shape: f32[4,40,3], index: 0, kind: input, shape index: {}]
  %s1 = inlined_call_operand.vmem [shape: f32[8,120], index: 1, kind: input, shape index: {}]
  %s2 = inlined_call_operand.vmem [shape: f32[4,8,1], index: 2, kind: input, shape index: {}]
  %s3 = inlined_call_operand.vmem [shape: bf16[4,40,256], index: 3, kind: input, shape index: {}]
  %s4 = inlined_call_operand.vmem [shape: f32[4,8,256], index: 4, kind: output, shape index: {}]
  %s5 = sld [smem:[#allocation0]]
  $region49: #{m_csconv_forward.1} parent=0
    _
  %s7 = ssub.s32 1, %s5
  %s8 = scalar_select 0, %s7, %s5
  loop: start=0, step=1, limit=4
  $region2: #{m_csconv_forward.1} parent=0 // loop_pre_header
    _
  $region3: #{m_csconv_forward.1} parent=0 // loop_header
    %s10 = sphi 0, %s14
    %p11 = scmp.ge.s32.totalorder %s10, 4
    %s20 = sphi 0, %s22
    %s23 = sphi 0, %s20
    %s24 = sphi 0, %s23
    %s40 = sphi 0, %s24
    %s44 = sphi 0, %s44
    %s46 = sphi 0, %s44
    %s47 = sphi 0, %s46
    %s61 = sphi 0, %s47
    %s67 = sphi 0, %s69
    %s70 = sphi 0, %s67
    %s71 = sphi 0, %s70
    %s87 = sphi 0, %s71
    %s93 = sphi 0, %s95
    %s96 = sphi 0, %s93
    %s97 = sphi 0, %s96
    %s113 = sphi 0, %s97
    %s119 = sphi 0, %s121
    %s122 = sphi 0, %s119
    %s123 = sphi 0, %s122
    %s139 = sphi 0, %s123
  $region4: #{m_csconv_forward.1} parent=0 // loop_header_branch
    %13 = sbr.rel (%p11) target = $region8
  $region5: #{m_csconv_forward.1} parent=0 // loop_body
    %s15 = ssub.s32 %s10, 1
    %s16 = ssub.s32 %s10, 2
    %s17 = sadd.s32 %s10, 1
    %s18 = ssub.s32 %s10, %s17
    %p19 = scmp.eq.s32.totalorder %s18, 0
    %s21 = sadd.s32 %s20, 1
    %s22 = scalar_select %p19, %s20, %s21
    %p25 = pneg %p19
    %p26 = scmp.eq.s32.totalorder %s10, 1
    %p27 = por %p25, %p26
    %p28 = scmp.ne.s32.totalorder %s20, %s23
    %p29 = scmp.eq.s32.totalorder %s10, 0
    %p30 = por %p28, %p29
    %p31 = scmp.ne.s32.totalorder %s20, %s23
    %p32 = scmp.eq.s32.totalorder %s15, 1
    %p33 = por %p31, %p32
    %p34 = scmp.ne.s32.totalorder %s23, %s24
    %p35 = scmp.eq.s32.totalorder %s15, 0
    %p36 = por %p34, %p35
    %p37 = scmp.ne.s32.totalorder %s23, %s24
    %p38 = scmp.eq.s32.totalorder %s16, 1
    %p39 = por %p37, %p38
    %p41 = scmp.ne.s32.totalorder %s24, %s40
    %p42 = scmp.eq.s32.totalorder %s16, 0
    %p43 = por %p41, %p42
    %s45 = sadd.s32 %s44, 1
    %p48 = scmp.eq.s32.totalorder %s10, 1
    %p49 = scmp.ne.s32.totalorder %s44, %s46
    %p50 = scmp.eq.s32.totalorder %s10, 0
    %p51 = por %p49, %p50
    %p52 = scmp.ne.s32.totalorder %s44, %s46
    %p53 = scmp.eq.s32.totalorder %s15, 1
    %p54 = por %p52, %p53
    %p55 = scmp.ne.s32.totalorder %s46, %s47
    %p56 = scmp.eq.s32.totalorder %s15, 0
    %p57 = por %p55, %p56
    %p58 = scmp.ne.s32.totalorder %s46, %s47
    %p59 = scmp.eq.s32.totalorder %s16, 1
    %p60 = por %p58, %p59
    %p62 = scmp.ne.s32.totalorder %s47, %s61
    %p63 = scmp.eq.s32.totalorder %s16, 0
    %p64 = por %p62, %p63
    %s65 = ssub.s32 %s10, %s17
    %p66 = scmp.eq.s32.totalorder %s65, 0
    %s68 = sadd.s32 %s67, 1
    %s69 = scalar_select %p66, %s67, %s68
    %p72 = pneg %p66
    %p73 = scmp.eq.s32.totalorder %s10, 1
    %p74 = por %p72, %p73
    %p75 = scmp.ne.s32.totalorder %s67, %s70
    %p76 = scmp.eq.s32.totalorder %s10, 0
    %p77 = por %p75, %p76
    %p78 = scmp.ne.s32.totalorder %s67, %s70
    %p79 = scmp.eq.s32.totalorder %s15, 1
    %p80 = por %p78, %p79
    %p81 = scmp.ne.s32.totalorder %s70, %s71
    %p82 = scmp.eq.s32.totalorder %s15, 0
    %p83 = por %p81, %p82
    %p84 = scmp.ne.s32.totalorder %s70, %s71
    %p85 = scmp.eq.s32.totalorder %s16, 1
    %p86 = por %p84, %p85
    %p88 = scmp.ne.s32.totalorder %s71, %s87
    %p89 = scmp.eq.s32.totalorder %s16, 0
    %p90 = por %p88, %p89
    %s91 = ssub.s32 %s10, %s17
    %p92 = scmp.eq.s32.totalorder %s91, 0
    %s94 = sadd.s32 %s93, 1
    %s95 = scalar_select %p92, %s93, %s94
    %p98 = pneg %p92
    %p99 = scmp.eq.s32.totalorder %s10, 1
    %p100 = por %p98, %p99
    %p101 = scmp.ne.s32.totalorder %s93, %s96
    %p102 = scmp.eq.s32.totalorder %s10, 0
    %p103 = por %p101, %p102
    %p104 = scmp.ne.s32.totalorder %s93, %s96
    %p105 = scmp.eq.s32.totalorder %s15, 1
    %p106 = por %p104, %p105
    %p107 = scmp.ne.s32.totalorder %s96, %s97
    %p108 = scmp.eq.s32.totalorder %s15, 0
    %p109 = por %p107, %p108
    %p110 = scmp.ne.s32.totalorder %s96, %s97
    %p111 = scmp.eq.s32.totalorder %s16, 1
    %p112 = por %p110, %p111
    %p114 = scmp.ne.s32.totalorder %s97, %s113
    %p115 = scmp.eq.s32.totalorder %s16, 0
    %p116 = por %p114, %p115
    %s117 = ssub.s32 %s10, %s17
    %p118 = scmp.eq.s32.totalorder %s117, 0
    %s120 = sadd.s32 %s119, 1
    %s121 = scalar_select %p118, %s119, %s120
    %p124 = pneg %p118
    %p125 = scmp.eq.s32.totalorder %s10, 1
    %p126 = por %p124, %p125
    %p127 = scmp.ne.s32.totalorder %s119, %s122
    %p128 = scmp.eq.s32.totalorder %s10, 0
    %p129 = por %p127, %p128
    %p130 = scmp.ne.s32.totalorder %s119, %s122
    %p131 = scmp.eq.s32.totalorder %s15, 1
    %p132 = por %p130, %p131
    %p133 = scmp.ne.s32.totalorder %s122, %s123
    %p134 = scmp.eq.s32.totalorder %s15, 0
    %p135 = por %p133, %p134
    %p136 = scmp.ne.s32.totalorder %s122, %s123
    %p137 = scmp.eq.s32.totalorder %s16, 1
    %p138 = por %p136, %p137
    %p140 = scmp.ne.s32.totalorder %s123, %s139
    %p141 = scmp.eq.s32.totalorder %s16, 0
    %p142 = por %p140, %p141
    %p143 = scmp.le.s32.totalorder 1, %s10
    %p144 = scmp.lt.s32.totalorder %s10, 3
    %p145 = pnand %p143, %p144
    %p146 = pneg %p145
    // Predicated region
    $region9: #{m_csconv_forward.1} parent=5 // pred_check
      _
    $region10: #{m_csconv_forward.1} parent=5 // pred_check_branch
      %148 = sbr.rel (%p145) target = $region12
    $region11: #{m_csconv_forward.1} parent=5 // pred_region
      %s149 = ssub.s32 %s10, 1
      // Predicated region
      $region13: #{m_csconv_forward.1} parent=11 // pred_check
        %p150 = pneg %p57
      $region14: #{m_csconv_forward.1} parent=11 // pred_check_branch
        %152 = sbr.rel (%p150) target = $region16
      $region15: #{m_csconv_forward.1} parent=11 // pred_region
        _
      $region16: #{m_csconv_forward.1} parent=11 // pred_fallthru
        _
    $region12: #{m_csconv_forward.1} parent=5 // pred_fallthru
      _
    %p153 = scmp.lt.s32.totalorder %s10, 2
    // Predicated region
    $region17: #{m_csconv_forward.1} parent=5 // pred_check
      %p154 = pneg %p153
    $region18: #{m_csconv_forward.1} parent=5 // pred_check_branch
      %156 = sbr.rel (%p154) target = $region20
    $region19: #{m_csconv_forward.1} parent=5 // pred_region
      // Predicated region
      $region21: #{m_csconv_forward.1} parent=19 // pred_check
        %p157 = pneg %p30
      $region22: #{m_csconv_forward.1} parent=19 // pred_check_branch
        %159 = sbr.rel (%p157) target = $region24
      $region23: #{m_csconv_forward.1} parent=19 // pred_region
        %s160 = smul.u32 2, %s10
        %p161 = scmp.lt.s32.totalorder %s160, 3
        %s162 = scalar_select %p161, %s160, 3
        %s163 = smul.addr %s162, 5
        %s164 = smul.addr %s163, 8
        %s165 = scalar_lea.vmem %s0, %s164
        %s166 = smul.u32 2, %s10
      $region24: #{m_csconv_forward.1} parent=19 // pred_fallthru
        _
      // Predicated region
      $region25: #{m_csconv_forward.1} parent=19 // pred_check
        %p167 = pneg %p77
      $region26: #{m_csconv_forward.1} parent=19 // pred_check_branch
        %169 = sbr.rel (%p167) target = $region28
      $region27: #{m_csconv_forward.1} parent=19 // pred_region
        %s170 = smul.u32 2, %s10
        %p171 = scmp.lt.s32.totalorder %s170, 3
        %s172 = scalar_select %p171, %s170, 3
        %s173 = smul.addr %s172, 8
        %s174 = scalar_lea.vmem %s2, %s173
        %s175 = smul.u32 2, %s10
      $region28: #{m_csconv_forward.1} parent=19 // pred_fallthru
        _
      // Predicated region
      $region29: #{m_csconv_forward.1} parent=19 // pred_check
        %p176 = pneg %p103
      $region30: #{m_csconv_forward.1} parent=19 // pred_check_branch
        %178 = sbr.rel (%p176) target = $region32
      $region31: #{m_csconv_forward.1} parent=19 // pred_region
        %s179 = smul.u32 2, %s10
        %p180 = scmp.lt.s32.totalorder %s179, 3
        %s181 = scalar_select %p180, %s179, 3
        %s182 = smul.addr %s181, 10
        %s183 = smul.addr %s182, 4
        %s184 = scalar_lea.vmem %s3, %s183
        %s185 = smul.u32 2, %s10
      $region32: #{m_csconv_forward.1} parent=19 // pred_fallthru
        _
    $region20: #{m_csconv_forward.1} parent=5 // pred_fallthru
      _
    %p186 = scmp.le.s32.totalorder 1, %s10
    %p187 = scmp.lt.s32.totalorder %s10, 3
    %p188 = pnand %p186, %p187
    %p189 = pneg %p188
    // Predicated region
    $region33: #{m_csconv_forward.1} parent=5 // pred_check
      _
    $region34: #{m_csconv_forward.1} parent=5 // pred_check_branch
      %191 = sbr.rel (%p188) target = $region36
    $region35: #{m_csconv_forward.1} parent=5 // pred_region
      %s192 = ssub.s32 %s10, 1
      %s193 = smul.u32 2, %s15
      %p194 = scmp.lt.s32.totalorder %s193, 3
      %s195 = scalar_select %p194, %s193, 3
      %s196 = smul.addr %s195, 5
      %s197 = smul.addr %s196, 8
      %s198 = scalar_lea.vmem %s0, %s197
      %p199 = pneg %p36
      %p200 = pneg %p33
      %p201 = pneg %p57
      %p202 = pneg %p54
      %s203 = smul.u32 2, %s15
      %p204 = scmp.lt.s32.totalorder %s203, 3
      %s205 = scalar_select %p204, %s203, 3
      %s206 = smul.addr %s205, 8
      %s207 = scalar_lea.vmem %s2, %s206
      %p208 = pneg %p83
      %p209 = pneg %p80
      %s210 = smul.u32 2, %s15
      %p211 = scmp.lt.s32.totalorder %s210, 3
      %s212 = scalar_select %p211, %s210, 3
      %s213 = smul.addr %s212, 10
      %s214 = smul.addr %s213, 4
      %s215 = scalar_lea.vmem %s3, %s214
      %p216 = pneg %p109
      %p217 = pneg %p106
      %p218 = pneg %p135
      %p219 = pneg %p132
      %s220 = smul.u32 2, %s15
      %p221 = scmp.lt.s32.totalorder %s220, 3
      %s222 = scalar_select %p221, %s220, 3
      %s223 = smul.addr %s222, 2
      %s224 = smul.addr %s223, 8
      %s225 = scalar_lea.vmem %s4, %s224
      %s226 = smul.u32 2, %s15
      %p227 = scmp.lt.s32.totalorder %s226, 3
      %s228 = scalar_select %p227, %s226, 3
      %s229 = smul.addr %s228, 5
      %s230 = smul.addr %s229, 8
      %s231 = scalar_lea.vmem %s0, %s230
      %s232 = smul.u32 2, %s15
      %s233 = smul.u32 2, %s15
      %p234 = scmp.lt.s32.totalorder %s233, 3
      %s235 = scalar_select %p234, %s233, 3
      %s236 = smul.addr %s235, 8
      %s237 = scalar_lea.vmem %s2, %s236
      %s238 = smul.u32 2, %s15
      %s239 = smul.u32 2, %s15
      %p240 = scmp.lt.s32.totalorder %s239, 3
      %s241 = scalar_select %p240, %s239, 3
      %s242 = smul.addr %s241, 10
      %s243 = smul.addr %s242, 4
      %s244 = scalar_lea.vmem %s3, %s243
      %s245 = smul.u32 2, %s15
      %s246 = smul.u32 2, %s15
      %p247 = scmp.lt.s32.totalorder %s246, 3
      %s248 = scalar_select %p247, %s246, 3
      %s249 = smul.addr %s248, 2
      %s250 = smul.addr %s249, 8
      %s251 = scalar_lea.vmem %s4, %s250
      %s252 = smul.u32 2, %s15
      %v253 = vld [vmem:[%s1] sm:$0xff]
      %v254 = vpack.c.bf16 %v253, %v253
      %v255 = vld [vmem:[%s244] sm:$0xff]
      %v256 = vld [vmem:[%s244 + $0x8] sm:$0xff]
      %v257 = vld [vmem:[%s244 + $0x10] sm:$0xff]
      %v258 = vld [vmem:[%s244 + $0x18] sm:$0xff]
      %v259 = vld [vmem:[%s244 + $0x20] sm:$0xff]
      %v260 = vunpack.c.l.bf16 %v255
      %v261 = vunpack.c.h.bf16 %v255
      %v262 = vunpack.c.l.bf16 %v256
      %v263 = vunpack.c.h.bf16 %v256
      %v264 = vunpack.c.l.bf16 %v257
      %v265 = vunpack.c.h.bf16 %v257
      %v266 = vunpack.c.l.bf16 %v258
      %v267 = vunpack.c.h.bf16 %v258
      %v268 = vunpack.c.l.bf16 %v259
      %v269 = vunpack.c.h.bf16 %v259
      %v270 = vld [vmem:[%s231] sm:$0xff]
      %v271 = vld [vmem:[%s231 + $0x8] sm:$0xff]
      %v272 = vld [vmem:[%s231 + $0x10] sm:$0xff]
      %v273 = vld [vmem:[%s231 + $0x18] sm:$0xff]
      %v274 = vld [vmem:[%s231 + $0x20] sm:$0xff]
      %276 = vset.pattern.permute.xlu0 0
      %277 = vperm.xlu0 %276, %v270
      %v278 = vpop.permute.xlu0 %277
      %281 = vset.pattern.permute.xlu0 0
      %282 = vperm.xlu0 %281, %v271
      %v283 = vpop.permute.xlu0 %282
      %286 = vset.pattern.permute.xlu0 0
      %287 = vperm.xlu0 %286, %v272
      %v288 = vpop.permute.xlu0 %287
      %291 = vset.pattern.permute.xlu0 0
      %292 = vperm.xlu0 %291, %v273
      %v293 = vpop.permute.xlu0 %292
      %296 = vset.pattern.permute.xlu0 0
      %297 = vperm.xlu0 %296, %v274
      %v298 = vpop.permute.xlu0 %297
      %v300 = vmul.f32 %v278, %v260
      %v301 = vmul.f32 %v278, %v261
      %v302 = vmul.f32 %v283, %v262
      %v303 = vmul.f32 %v283, %v263
      %v304 = vmul.f32 %v288, %v264
      %v305 = vmul.f32 %v288, %v265
      %v306 = vmul.f32 %v293, %v266
      %v307 = vmul.f32 %v293, %v267
      %v308 = vmul.f32 %v298, %v268
      %v309 = vmul.f32 %v298, %v269
      %310 = vset.pattern.permute.xlu0 1
      %311 = vperm.xlu0 %310, %v270
      %v312 = vpop.permute.xlu0 %311
      %314 = vset.pattern.permute.xlu0 1
      %315 = vperm.xlu0 %314, %v271
      %v316 = vpop.permute.xlu0 %315
      %318 = vset.pattern.permute.xlu0 1
      %319 = vperm.xlu0 %318, %v272
      %v320 = vpop.permute.xlu0 %319
      %322 = vset.pattern.permute.xlu0 1
      %323 = vperm.xlu0 %322, %v273
      %v324 = vpop.permute.xlu0 %323
      %326 = vset.pattern.permute.xlu0 1
      %327 = vperm.xlu0 %326, %v274
      %v328 = vpop.permute.xlu0 %327
      %v330 = vmul.f32 %v312, %v260
      %v331 = vmul.f32 %v312, %v261
      %v332 = vmul.f32 %v316, %v262
      %v333 = vmul.f32 %v316, %v263
      %v334 = vmul.f32 %v320, %v264
      %v335 = vmul.f32 %v320, %v265
      %v336 = vmul.f32 %v324, %v266
      %v337 = vmul.f32 %v324, %v267
      %v338 = vmul.f32 %v328, %v268
      %v339 = vmul.f32 %v328, %v269
      %340 = vset.pattern.permute.xlu0 2
      %341 = vperm.xlu0 %340, %v270
      %v342 = vpop.permute.xlu0 %341
      %344 = vset.pattern.permute.xlu0 2
      %345 = vperm.xlu0 %344, %v271
      %v346 = vpop.permute.xlu0 %345
      %348 = vset.pattern.permute.xlu0 2
      %349 = vperm.xlu0 %348, %v272
      %v350 = vpop.permute.xlu0 %349
      %352 = vset.pattern.permute.xlu0 2
      %353 = vperm.xlu0 %352, %v273
      %v354 = vpop.permute.xlu0 %353
      %356 = vset.pattern.permute.xlu0 2
      %357 = vperm.xlu0 %356, %v274
      %v358 = vpop.permute.xlu0 %357
      %v360 = vmul.f32 %v342, %v260
      %v361 = vmul.f32 %v342, %v261
      %v362 = vmul.f32 %v346, %v262
      %v363 = vmul.f32 %v346, %v263
      %v364 = vmul.f32 %v350, %v264
      %v365 = vmul.f32 %v350, %v265
      %v366 = vmul.f32 %v354, %v266
      %v367 = vmul.f32 %v354, %v267
      %v368 = vmul.f32 %v358, %v268
      %v369 = vmul.f32 %v358, %v269
      %v370 = vpack.c.bf16 %v301, %v300
      %v371 = vpack.c.bf16 %v303, %v302
      %v372 = vpack.c.bf16 %v305, %v304
      %v373 = vpack.c.bf16 %v307, %v306
      %v374 = vpack.c.bf16 %v309, %v308
      %v375 = vpack.c.bf16 %v331, %v330
      %v376 = vpack.c.bf16 %v333, %v332
      %v377 = vpack.c.bf16 %v335, %v334
      %v378 = vpack.c.bf16 %v337, %v336
      %v379 = vpack.c.bf16 %v339, %v338
      %v380 = vpack.c.bf16 %v361, %v360
      %v381 = vpack.c.bf16 %v363, %v362
      %v382 = vpack.c.bf16 %v365, %v364
      %v383 = vpack.c.bf16 %v367, %v366
      %v384 = vpack.c.bf16 %v369, %v368
      %s385 = scalar_lea.vmem %s244, 40
      %v386 = vld [vmem:[%s385] sm:$0xff]
      %v387 = vld [vmem:[%s385 + $0x8] sm:$0xff]
      %v388 = vld [vmem:[%s385 + $0x10] sm:$0xff]
      %v389 = vld [vmem:[%s385 + $0x18] sm:$0xff]
      %v390 = vld [vmem:[%s385 + $0x20] sm:$0xff]
      %v391 = vunpack.c.l.bf16 %v386
      %v392 = vunpack.c.h.bf16 %v386
      %v393 = vunpack.c.l.bf16 %v387
      %v394 = vunpack.c.h.bf16 %v387
      %v395 = vunpack.c.l.bf16 %v388
      %v396 = vunpack.c.h.bf16 %v388
      %v397 = vunpack.c.l.bf16 %v389
      %v398 = vunpack.c.h.bf16 %v389
      %v399 = vunpack.c.l.bf16 %v390
      %v400 = vunpack.c.h.bf16 %v390
      %s401 = scalar_lea.vmem %s231, 40
      %v402 = vld [vmem:[%s401] sm:$0xff]
      %v403 = vld [vmem:[%s401 + $0x8] sm:$0xff]
      %v404 = vld [vmem:[%s401 + $0x10] sm:$0xff]
      %v405 = vld [vmem:[%s401 + $0x18] sm:$0xff]
      %v406 = vld [vmem:[%s401 + $0x20] sm:$0xff]
      %408 = vset.pattern.permute.xlu0 0
      %409 = vperm.xlu0 %408, %v402
      %v410 = vpop.permute.xlu0 %409
      %413 = vset.pattern.permute.xlu0 0
      %414 = vperm.xlu0 %413, %v403
      %v415 = vpop.permute.xlu0 %414
      %418 = vset.pattern.permute.xlu0 0
      %419 = vperm.xlu0 %418, %v404
      %v420 = vpop.permute.xlu0 %419
      %423 = vset.pattern.permute.xlu0 0
      %424 = vperm.xlu0 %423, %v405
      %v425 = vpop.permute.xlu0 %424
      %428 = vset.pattern.permute.xlu0 0
      %429 = vperm.xlu0 %428, %v406
      %v430 = vpop.permute.xlu0 %429
      %v432 = vmul.f32 %v410, %v391
      %v433 = vmul.f32 %v410, %v392
      %v434 = vmul.f32 %v415, %v393
      %v435 = vmul.f32 %v415, %v394
      %v436 = vmul.f32 %v420, %v395
      %v437 = vmul.f32 %v420, %v396
      %v438 = vmul.f32 %v425, %v397
      %v439 = vmul.f32 %v425, %v398
      %v440 = vmul.f32 %v430, %v399
      %v441 = vmul.f32 %v430, %v400
      %442 = vset.pattern.permute.xlu0 1
      %443 = vperm.xlu0 %442, %v402
      %v444 = vpop.permute.xlu0 %443
      %446 = vset.pattern.permute.xlu0 1
      %447 = vperm.xlu0 %446, %v403
      %v448 = vpop.permute.xlu0 %447
      %450 = vset.pattern.permute.xlu0 1
      %451 = vperm.xlu0 %450, %v404
      %v452 = vpop.permute.xlu0 %451
      %454 = vset.pattern.permute.xlu0 1
      %455 = vperm.xlu0 %454, %v405
      %v456 = vpop.permute.xlu0 %455
      %458 = vset.pattern.permute.xlu0 1
      %459 = vperm.xlu0 %458, %v406
      %v460 = vpop.permute.xlu0 %459
      %v462 = vmul.f32 %v444, %v391
      %v463 = vmul.f32 %v444, %v392
      %v464 = vmul.f32 %v448, %v393
      %v465 = vmul.f32 %v448, %v394
      %v466 = vmul.f32 %v452, %v395
      %v467 = vmul.f32 %v452, %v396
      %v468 = vmul.f32 %v456, %v397
      %v469 = vmul.f32 %v456, %v398
      %v470 = vmul.f32 %v460, %v399
      %v471 = vmul.f32 %v460, %v400
      %472 = vset.pattern.permute.xlu0 2
      %473 = vperm.xlu0 %472, %v402
      %v474 = vpop.permute.xlu0 %473
      %476 = vset.pattern.permute.xlu0 2
      %477 = vperm.xlu0 %476, %v403
      %v478 = vpop.permute.xlu0 %477
      %480 = vset.pattern.permute.xlu0 2
      %481 = vperm.xlu0 %480, %v404
      %v482 = vpop.permute.xlu0 %481
      %484 = vset.pattern.permute.xlu0 2
      %485 = vperm.xlu0 %484, %v405
      %v486 = vpop.permute.xlu0 %485
      %488 = vset.pattern.permute.xlu0 2
      %489 = vperm.xlu0 %488, %v406
      %v490 = vpop.permute.xlu0 %489
      %v492 = vmul.f32 %v474, %v391
      %v493 = vmul.f32 %v474, %v392
      %v494 = vmul.f32 %v478, %v393
      %v495 = vmul.f32 %v478, %v394
      %v496 = vmul.f32 %v482, %v395
      %v497 = vmul.f32 %v482, %v396
      %v498 = vmul.f32 %v486, %v397
      %v499 = vmul.f32 %v486, %v398
      %v500 = vmul.f32 %v490, %v399
      %v501 = vmul.f32 %v490, %v400
      %v502 = vpack.c.bf16 %v433, %v432
      %v503 = vpack.c.bf16 %v435, %v434
      %v504 = vpack.c.bf16 %v437, %v436
      %v505 = vpack.c.bf16 %v439, %v438
      %v506 = vpack.c.bf16 %v441, %v440
      %v507 = vpack.c.bf16 %v463, %v462
      %v508 = vpack.c.bf16 %v465, %v464
      %v509 = vpack.c.bf16 %v467, %v466
      %v510 = vpack.c.bf16 %v469, %v468
      %v511 = vpack.c.bf16 %v471, %v470
      %v512 = vpack.c.bf16 %v493, %v492
      %v513 = vpack.c.bf16 %v495, %v494
      %v514 = vpack.c.bf16 %v497, %v496
      %v515 = vpack.c.bf16 %v499, %v498
      %v516 = vpack.c.bf16 %v501, %v500
      %v532 = vunpack.c.l.b16 %v370
      %v533 = vunpack.c.h.b16 %v370
      %v534 = vunpack.c.l.b16 %v371
      %v535 = vunpack.c.h.b16 %v371
      %v536 = vunpack.c.l.b16 %v372
      %v537 = vunpack.c.h.b16 %v372
      %v538 = vunpack.c.l.b16 %v373
      %v539 = vunpack.c.h.b16 %v373
      %v540 = vunpack.c.l.b16 %v374
      %v541 = vunpack.c.h.b16 %v374
      %v542 = vunpack.c.l.b16 %v375
      %v543 = vunpack.c.h.b16 %v375
      %v544 = vunpack.c.l.b16 %v376
      %v545 = vunpack.c.h.b16 %v376
      %v546 = vunpack.c.l.b16 %v377
      %v547 = vunpack.c.h.b16 %v377
      %v548 = vunpack.c.l.b16 %v378
      %v549 = vunpack.c.h.b16 %v378
      %v550 = vunpack.c.l.b16 %v379
      %v551 = vunpack.c.h.b16 %v379
      %v552 = vunpack.c.l.b16 %v380
      %v553 = vunpack.c.h.b16 %v380
      %v554 = vunpack.c.l.b16 %v381
      %v555 = vunpack.c.h.b16 %v381
      %v556 = vunpack.c.l.b16 %v382
      %v557 = vunpack.c.h.b16 %v382
      %v558 = vunpack.c.l.b16 %v383
      %v559 = vunpack.c.h.b16 %v383
      %v560 = vunpack.c.l.b16 %v384
      %v561 = vunpack.c.h.b16 %v384
      %v562 = vpack.c.b16 %v534, %v532
      %v563 = vpack.c.b16 %v535, %v533
      %v564 = vpack.c.b16 %v538, %v536
      %v565 = vpack.c.b16 %v539, %v537
      %v566 = vpack.c.b16 %v542, %v540
      %v567 = vpack.c.b16 %v543, %v541
      %v568 = vpack.c.b16 %v546, %v544
      %v569 = vpack.c.b16 %v547, %v545
      %v570 = vpack.c.b16 %v550, %v548
      %v571 = vpack.c.b16 %v551, %v549
      %v572 = vpack.c.b16 %v554, %v552
      %v573 = vpack.c.b16 %v555, %v553
      %v574 = vpack.c.b16 %v558, %v556
      %v575 = vpack.c.b16 %v559, %v557
      %v576 = vpack.c.b16 %v560, %v560
      %v577 = vpack.c.b16 %v561, %v561
      %v607 = vunpack.c.l.b16 %v502
      %v608 = vunpack.c.h.b16 %v502
      %v609 = vunpack.c.l.b16 %v503
      %v610 = vunpack.c.h.b16 %v503
      %v611 = vunpack.c.l.b16 %v504
      %v612 = vunpack.c.h.b16 %v504
      %v613 = vunpack.c.l.b16 %v505
      %v614 = vunpack.c.h.b16 %v505
      %v615 = vunpack.c.l.b16 %v506
      %v616 = vunpack.c.h.b16 %v506
      %v617 = vunpack.c.l.b16 %v507
      %v618 = vunpack.c.h.b16 %v507
      %v619 = vunpack.c.l.b16 %v508
      %v620 = vunpack.c.h.b16 %v508
      %v621 = vunpack.c.l.b16 %v509
      %v622 = vunpack.c.h.b16 %v509
      %v623 = vunpack.c.l.b16 %v510
      %v624 = vunpack.c.h.b16 %v510
      %v625 = vunpack.c.l.b16 %v511
      %v626 = vunpack.c.h.b16 %v511
      %v627 = vunpack.c.l.b16 %v512
      %v628 = vunpack.c.h.b16 %v512
      %v629 = vunpack.c.l.b16 %v513
      %v630 = vunpack.c.h.b16 %v513
      %v631 = vunpack.c.l.b16 %v514
      %v632 = vunpack.c.h.b16 %v514
      %v633 = vunpack.c.l.b16 %v515
      %v634 = vunpack.c.h.b16 %v515
      %v635 = vunpack.c.l.b16 %v516
      %v636 = vunpack.c.h.b16 %v516
      %v637 = vpack.c.b16 %v609, %v607
      %v638 = vpack.c.b16 %v610, %v608
      %v639 = vpack.c.b16 %v613, %v611
      %v640 = vpack.c.b16 %v614, %v612
      %v641 = vpack.c.b16 %v617, %v615
      %v642 = vpack.c.b16 %v618, %v616
      %v643 = vpack.c.b16 %v621, %v619
      %v644 = vpack.c.b16 %v622, %v620
      %v645 = vpack.c.b16 %v625, %v623
      %v646 = vpack.c.b16 %v626, %v624
      %v647 = vpack.c.b16 %v629, %v627
      %v648 = vpack.c.b16 %v630, %v628
      %v649 = vpack.c.b16 %v633, %v631
      %v650 = vpack.c.b16 %v634, %v632
      %v651 = vpack.c.b16 %v635, %v635
      %v652 = vpack.c.b16 %v636, %v636
      %vm667 = vcmask 982016
      %v669 = vsel %vm667, %v254, 0
      %vm671 = vcmask 1043456
      %v673 = vsel %vm671, %v576, 0
      %v676 = vsel %vm671, %v577, 0
      %v679 = vsel %vm671, %v651, 0
      %v682 = vsel %vm671, %v652, 0
      %684 = vmatpush.bf16.msra.mxu0 %v673
      %685 = vmatpush.bf16.msra.mxu0 %v574
      %686 = vmatpush.bf16.msra.mxu0 %v572
      %687 = vmatpush.bf16.msra.mxu0 %v570
      %688 = vmatpush.bf16.msra.mxu0 %v568
      %689 = vmatpush.bf16.msra.mxu0 %v566
      %690 = vmatpush.bf16.msra.mxu0 %v564
      %691 = vmatpush.bf16.msra.mxu0 %v562
      %692 = vmatmul.bf16.gmra.mxu0 %v669
      %v693 = vpop.f32.mrf.mxu0
      %v694 = vadd.f32 0.0, %v693
      %v695 = vpop.f32.mrf.mxu0
      %696 = vdwg.mxu0
      %697 = vmatpush.bf16.msra.mxu0 %v676
      %698 = vmatpush.bf16.msra.mxu0 %v575
      %699 = vmatpush.bf16.msra.mxu0 %v573
      %700 = vmatpush.bf16.msra.mxu0 %v571
      %701 = vmatpush.bf16.msra.mxu0 %v569
      %702 = vmatpush.bf16.msra.mxu0 %v567
      %703 = vmatpush.bf16.msra.mxu0 %v565
      %704 = vmatpush.bf16.msra.mxu0 %v563
      %705 = vmatmul.bf16.gmra.mxu0 %v669
      %v706 = vpop.f32.mrf.mxu0
      %v707 = vadd.f32 0.0, %v706
      %v708 = vpop.f32.mrf.mxu0
      %709 = vdwg.mxu0
      %710 = vmatpush.bf16.msra.mxu0 %v679
      %711 = vmatpush.bf16.msra.mxu0 %v649
      %712 = vmatpush.bf16.msra.mxu0 %v647
      %713 = vmatpush.bf16.msra.mxu0 %v645
      %714 = vmatpush.bf16.msra.mxu0 %v643
      %715 = vmatpush.bf16.msra.mxu0 %v641
      %716 = vmatpush.bf16.msra.mxu0 %v639
      %717 = vmatpush.bf16.msra.mxu0 %v637
      %718 = vmatmul.bf16.gmra.mxu0 %v669
      %v719 = vpop.f32.mrf.mxu0
      %v720 = vadd.f32 0.0, %v719
      %v721 = vpop.f32.mrf.mxu0
      %722 = vdwg.mxu0
      %723 = vmatpush.bf16.msra.mxu0 %v682
      %724 = vmatpush.bf16.msra.mxu0 %v650
      %725 = vmatpush.bf16.msra.mxu0 %v648
      %726 = vmatpush.bf16.msra.mxu0 %v646
      %727 = vmatpush.bf16.msra.mxu0 %v644
      %728 = vmatpush.bf16.msra.mxu0 %v642
      %729 = vmatpush.bf16.msra.mxu0 %v640
      %730 = vmatpush.bf16.msra.mxu0 %v638
      %731 = vmatmul.bf16.gmra.mxu0 %v669
      %v732 = vpop.f32.mrf.mxu0
      %v733 = vadd.f32 0.0, %v732
      %v734 = vpop.f32.mrf.mxu0
      %735 = vdwg.mxu0
      %v736 = vld [vmem:[%s237] sm:$0xff]
      %738 = vset.pattern.permute.xlu0 0
      %739 = vperm.xlu0 %738, %v736
      %v740 = vpop.permute.xlu0 %739
      %v742 = vadd.f32 %v694, %v740
      %v743 = vadd.f32 %v707, %v740
      %744 = vst [vmem:[%s251] sm:$0xff] %v742
      %745 = vst [vmem:[%s251 + $0x8] sm:$0xff] %v743
      %s746 = scalar_lea.vmem %s237, 8
      %v747 = vld [vmem:[%s746] sm:$0xff]
      %749 = vset.pattern.permute.xlu0 0
      %750 = vperm.xlu0 %749, %v747
      %v751 = vpop.permute.xlu0 %750
      %v753 = vadd.f32 %v720, %v751
      %v754 = vadd.f32 %v733, %v751
      %s755 = scalar_lea.vmem %s251, 16
      %756 = vst [vmem:[%s755] sm:$0xff] %v753
      %757 = vst [vmem:[%s755 + $0x8] sm:$0xff] %v754
      %s758 = smul.u32 2, %s15
      %p759 = scmp.lt.s32.totalorder %s758, 3
      %s760 = scalar_select %p759, %s758, 3
      %s761 = smul.addr %s760, 2
      %s762 = smul.addr %s761, 8
      %s763 = scalar_lea.vmem %s4, %s762
      // Predicated region
      $region37: #{m_csconv_forward.1} parent=35 // pred_check
        %p764 = pneg %p132
      $region38: #{m_csconv_forward.1} parent=35 // pred_check_branch
        %766 = sbr.rel (%p764) target = $region40
      $region39: #{m_csconv_forward.1} parent=35 // pred_region
        %s767 = smul.u32 2, %s15
      $region40: #{m_csconv_forward.1} parent=35 // pred_fallthru
        _
    $region36: #{m_csconv_forward.1} parent=5 // pred_fallthru
      _
    %p768 = scmp.le.s32.totalorder 2, %s10
    // Predicated region
    $region41: #{m_csconv_forward.1} parent=5 // pred_check
      %p769 = pneg %p768
    $region42: #{m_csconv_forward.1} parent=5 // pred_check_branch
      %771 = sbr.rel (%p769) target = $region44
    $region43: #{m_csconv_forward.1} parent=5 // pred_region
      %s772 = ssub.s32 %s10, 2
      // Predicated region
      $region45: #{m_csconv_forward.1} parent=43 // pred_check
        %p773 = pneg %p138
      $region46: #{m_csconv_forward.1} parent=43 // pred_check_branch
        %775 = sbr.rel (%p773) target = $region48
      $region47: #{m_csconv_forward.1} parent=43 // pred_region
        %s776 = smul.u32 2, %s16
        %p777 = scmp.lt.s32.totalorder %s776, 3
        %s778 = scalar_select %p777, %s776, 3
        %s779 = smul.addr %s778, 2
        %s780 = smul.addr %s779, 8
        %s781 = scalar_lea.vmem %s4, %s780
      $region48: #{m_csconv_forward.1} parent=43 // pred_fallthru
        _
    $region44: #{m_csconv_forward.1} parent=5 // pred_fallthru
      _
  $region6: #{m_csconv_forward.1} parent=0 // loop_footer
    %s14 = sadd.s32 1, %s10
  $region7: #{m_csconv_forward.1} parent=0 // loop_footer_branch
    %9 = sbr.rel target = $region3
  $region8: #{m_csconv_forward.1} parent=0 // loop_exit
    _

</llo_original>
